<compile_context>
chip_gen: v6e
topology: v6e:2x2x1
jax: 0.10.0
libtpu: 0.0.40
codegen_flags: <defaults>
</compile_context>

<pallas_src>
import jax
import jax.numpy as jnp
from jax.experimental import pallas as pl
from jax.experimental.pallas import tpu as pltpu


def _attention_pool_kernel(x_ref, w1_ref, b1_ref, w2_ref, o_ref):
    # x_ref: (TB, S, D), w1_ref: (D, H), b1_ref: (1, H), w2_ref: (1, H),
    # o_ref: (TB, D)
    tb, s, d = x_ref.shape
    h_dim = w1_ref.shape[1]
    x = x_ref[...]                                            # (TB, S, D)

    # --- attention MLP -----------------------------------------------------
    # One MXU matmul with M = TB*S (merging leading dims is layout-free since
    # the last dim is untouched and S stays sublane-tiled).
    x2 = x.reshape(tb * s, d)
    h = jnp.tanh(
        jnp.dot(x2, w1_ref[...], preferred_element_type=jnp.float32)
        + b1_ref[...]
    )                                                         # (TB*S, H)

    # Second Linear (H -> 1) as an elementwise mul + lane reduction (keeps the
    # lane dim wide instead of producing a width-1 matmul output).
    # b2 omitted: softmax over axis=1 is shift-invariant.
    scores = jnp.sum(h.reshape(tb, s, h_dim) * w2_ref[...], axis=-1)  # (TB, S)

    # --- softmax over the sequence axis (lanes) -----------------------------
    m = jnp.max(scores, axis=-1, keepdims=True)               # (TB, 1)
    e = jnp.exp(scores - m)                                   # (TB, S)
    denom = jnp.sum(e, axis=-1, keepdims=True)                # (TB, 1)
    r = pl.reciprocal(denom, approx=True)                     # EUP slot
    r = r * (2.0 - denom * r)                                 # Newton -> f32 accuracy
    attn = e * r                                              # (TB, S)

    # --- weighted sum over the sequence -> (TB, D) store ---------------------
    o_ref[...] = jnp.sum(x * attn[:, :, None], axis=1)        # (TB, D)


def _choose_batch_tile(B, S, D, H, vmem_budget_bytes):
    """Largest batch tile that fits the VMEM budget, sublane-aligned."""
    # Per-batch-element VMEM bytes of one pipelined block (f32):
    #   double-buffered x tile + h intermediate + double-buffered output + slack.
    per_b = 4 * (2 * S * D + S * H + 2 * D + 4 * S)
    tb = max(1, vmem_budget_bytes // per_b)
    tb = min(tb, B, 1024)
    if tb < B:
        # Multi-block grid: keep the out-block batch dim a multiple of 8
        # (sublane-aligned stores); input is padded up to a whole grid.
        tb = max(8, (tb // 8) * 8)
    elif B >= 16:
        # Whole batch would fit in one block: split into >= 2 blocks so both
        # TensorCores (v7x) get work via dimension_semantics=("parallel",).
        tb = max(8, ((B // 2) // 8) * 8)
    return tb


def attention_pool_1d(x, w1, b1, w2, b2=None, *, batch_tile=None):
    """Pallas forward pass of AttentionPool1D.

    Args:
      x:  (B, S, D) float32
      w1: (D, H)    first Linear weight, laid out for x @ w1
      b1: (H,)      first Linear bias
      w2: (H, 1) or (H,)  second Linear weight
      b2: accepted for parity with the PyTorch module but unused: softmax is
          shift-invariant, so a scalar bias on the scores cannot change the
          output.
    Returns:
      (B, D) float32
    """
    del b2  # mathematical no-op under softmax
    B, S, D = x.shape
    H = w1.shape[1]

    x = x.astype(jnp.float32)
    w1 = w1.astype(jnp.float32)
    b1_2d = b1.reshape(1, H).astype(jnp.float32)
    w2_row = w2.reshape(1, H).astype(jnp.float32)

    vmem_limit = 32 * 1024 * 1024
    if batch_tile is None:
        tb = _choose_batch_tile(B, S, D, H, vmem_budget_bytes=vmem_limit // 2)
    else:
        tb = int(batch_tile)

    num_blocks = pl.cdiv(B, tb)
    b_padded = num_blocks * tb
    x_in = x if b_padded == B else jnp.pad(x, ((0, b_padded - B), (0, 0), (0, 0)))

    cost = pl.CostEstimate(
        flops=2 * B * S * D * H + 2 * B * S * H + 2 * B * S * D,
        transcendentals=B * S * H + B * S,
        bytes_accessed=4 * (B * S * D + B * D + D * H + 2 * H),
    )

    out = pl.pallas_call(
        _attention_pool_kernel,
        out_shape=jax.ShapeDtypeStruct((b_padded, D), jnp.float32),
        grid_spec=pltpu.PrefetchScalarGridSpec(
            num_scalar_prefetch=0,
            grid=(num_blocks,),
            in_specs=[
                pl.BlockSpec((tb, S, D), lambda b: (b, 0, 0)),
                pl.BlockSpec((D, H), lambda b: (0, 0)),
                pl.BlockSpec((1, H), lambda b: (0, 0)),
                pl.BlockSpec((1, H), lambda b: (0, 0)),
            ],
            out_specs=pl.BlockSpec((tb, D), lambda b: (b, 0)),
        ),
        compiler_params=pltpu.CompilerParams(
            dimension_semantics=("parallel",),
            vmem_limit_bytes=vmem_limit,
        ),
        cost_estimate=cost,
    )(x_in, w1, b1_2d, w2_row)

    return out if b_padded == B else out[:B]


def _reference(x, w1, b1, w2, b2):
    scores = jnp.tanh(x @ w1 + b1) @ w2 + b2        # (B, S, 1)
    attn = jax.nn.softmax(scores, axis=1)
    return jnp.sum(x * attn, axis=1)


if __name__ == "__main__":
    key = jax.random.PRNGKey(0)
    kx, kw1, kb1, kw2, kb2, kx2 = jax.random.split(key, 6)

    # Small shapes consistent with the module: (batch, seq_len, input_dim).
    B, S, D = 2, 8, 32
    H = D  # hidden_dim defaults to input_dim

    w1 = jax.random.normal(kw1, (D, H), dtype=jnp.float32) * 0.1
    b1 = jax.random.normal(kb1, (H,), dtype=jnp.float32) * 0.1
    w2 = jax.random.normal(kw2, (H, 1), dtype=jnp.float32) * 0.1
    b2 = jax.random.normal(kb2, (1,), dtype=jnp.float32) * 0.1

    ok = True

    # Case 1: tiny batch, single grid block (TB == B).
    x = jax.random.normal(kx, (B, S, D), dtype=jnp.float32)
    out = jax.block_until_ready(attention_pool_1d(x, w1, b1, w2, b2))
    ref = _reference(x, w1, b1, w2, b2)
    ok &= out.shape == (B, D)
    ok &= bool(jnp.allclose(out, ref, atol=1e-4, rtol=1e-4))

    # Case 2: batch not divisible by the tile -> multi-block grid + padding
    # (exercises the batch-tiled path: TB=8, grid=2, sublane-aligned stores).
    B2 = 10
    x2 = jax.random.normal(kx2, (B2, S, D), dtype=jnp.float32)
    out2 = jax.block_until_ready(
        attention_pool_1d(x2, w1, b1, w2, b2, batch_tile=8))
    ref2 = _reference(x2, w1, b1, w2, b2)
    ok &= out2.shape == (B2, D)
    ok &= bool(jnp.allclose(out2, ref2, atol=1e-4, rtol=1e-4))

    if ok:
        print("KERNEL_OK")
    else:
        print("KERNEL_MISMATCH",
              float(jnp.max(jnp.abs(out - ref))),
              float(jnp.max(jnp.abs(out2 - ref2))))
</pallas_src>

<mosaic_0001>
module attributes {stable_mosaic.version = 11 : i64} {
  func.func @_attention_pool_kernel(%arg0: i32, %arg1: memref<2x8x32xf32, #tpu.memory_space<vmem>>, %arg2: memref<32x32xf32, #tpu.memory_space<vmem>>, %arg3: memref<1x32xf32, #tpu.memory_space<vmem>>, %arg4: memref<1x32xf32, #tpu.memory_space<vmem>>, %arg5: memref<2x32xf32, #tpu.memory_space<vmem>>) attributes {dimension_semantics = [#tpu.dimension_semantics<parallel>], iteration_bounds = array<i64: 1>, scalar_prefetch = 0 : i64, scratch_operands = 0 : i64, tpu.core_type = #tpu.core_type<tc>, window_params = [{transform_indices = @transform_0, window_bounds = array<i64: 2, 8, 32>}, {pipeline_mode = #tpu.pipeline_mode<synchronous>, transform_indices = @transform_1, window_bounds = array<i64: 32, 32>}, {pipeline_mode = #tpu.pipeline_mode<synchronous>, transform_indices = @transform_2, window_bounds = array<i64: 1, 32>}, {pipeline_mode = #tpu.pipeline_mode<synchronous>, transform_indices = @transform_3, window_bounds = array<i64: 1, 32>}, {transform_indices = @transform_4, window_bounds = array<i64: 2, 32>}]} {
    %c0 = arith.constant 0 : index
    %c0_0 = arith.constant 0 : index
    %c0_1 = arith.constant 0 : index
    %0 = vector.load %arg1[%c0, %c0_0, %c0_1] : memref<2x8x32xf32, #tpu.memory_space<vmem>>, vector<2x8x32xf32>
    %1 = vector.shape_cast %0 : vector<2x8x32xf32> to vector<16x32xf32>
    %c0_2 = arith.constant 0 : index
    %c0_3 = arith.constant 0 : index
    %2 = vector.load %arg2[%c0_2, %c0_3] : memref<32x32xf32, #tpu.memory_space<vmem>>, vector<32x32xf32>
    %cst = arith.constant dense<0.000000e+00> : vector<16x32xf32>
    %3 = tpu.matmul %1, %2, %cst {dimension_numbers = #tpu.dot_dimension_numbers<[1], [0], [0], [1], [0, 0, 1, 1], [], []>} : vector<16x32xf32>, vector<32x32xf32>, vector<16x32xf32> -> vector<16x32xf32>
    %c0_4 = arith.constant 0 : index
    %c0_5 = arith.constant 0 : index
    %4 = vector.load %arg3[%c0_4, %c0_5] : memref<1x32xf32, #tpu.memory_space<vmem>>, vector<1x32xf32>
    %5 = vector.broadcast %4 : vector<1x32xf32> to vector<16x32xf32>
    %6 = arith.addf %3, %5 : vector<16x32xf32>
    %7 = math.tanh %6 : vector<16x32xf32>
    %8 = vector.shape_cast %7 : vector<16x32xf32> to vector<2x8x32xf32>
    %c0_6 = arith.constant 0 : index
    %c0_7 = arith.constant 0 : index
    %9 = vector.load %arg4[%c0_6, %c0_7] : memref<1x32xf32, #tpu.memory_space<vmem>>, vector<1x32xf32>
    %10 = vector.shape_cast %9 : vector<1x32xf32> to vector<1x1x32xf32>
    %11 = vector.broadcast %10 : vector<1x1x32xf32> to vector<2x8x32xf32>
    %12 = arith.mulf %8, %11 : vector<2x8x32xf32>
    %cst_8 = arith.constant dense<0.000000e+00> : vector<2x8xf32>
    %13 = vector.multi_reduction <add>, %12, %cst_8 [2] : vector<2x8x32xf32> to vector<2x8xf32>
    %cst_9 = arith.constant dense<0xFF800000> : vector<2xf32>
    %14 = vector.multi_reduction <maximumf>, %13, %cst_9 [1] : vector<2x8xf32> to vector<2xf32>
    %15 = vector.shape_cast %14 : vector<2xf32> to vector<2x1xf32>
    %16 = vector.broadcast %15 : vector<2x1xf32> to vector<2x8xf32>
    %17 = arith.subf %13, %16 : vector<2x8xf32>
    %18 = math.exp %17 : vector<2x8xf32>
    %cst_10 = arith.constant dense<0.000000e+00> : vector<2xf32>
    %19 = vector.multi_reduction <add>, %18, %cst_10 [1] : vector<2x8xf32> to vector<2xf32>
    %20 = vector.shape_cast %19 : vector<2xf32> to vector<2x1xf32>
    %21 = tpu.reciprocal %20 {approx = true} : vector<2x1xf32> -> vector<2x1xf32>
    %22 = arith.mulf %20, %21 : vector<2x1xf32>
    %cst_11 = arith.constant 2.000000e+00 : f32
    %23 = vector.broadcast %cst_11 : f32 to vector<2x1xf32>
    %24 = arith.subf %23, %22 : vector<2x1xf32>
    %25 = arith.mulf %21, %24 : vector<2x1xf32>
    %26 = vector.broadcast %25 : vector<2x1xf32> to vector<2x8xf32>
    %27 = arith.mulf %18, %26 : vector<2x8xf32>
    %28 = vector.shape_cast %27 : vector<2x8xf32> to vector<2x8x1xf32>
    %29 = vector.broadcast %28 : vector<2x8x1xf32> to vector<2x8x32xf32>
    %30 = arith.mulf %0, %29 : vector<2x8x32xf32>
    %cst_12 = arith.constant dense<0.000000e+00> : vector<2x32xf32>
    %31 = vector.multi_reduction <add>, %30, %cst_12 [1] : vector<2x8x32xf32> to vector<2x32xf32>
    %c0_13 = arith.constant 0 : index
    %c0_14 = arith.constant 0 : index
    %32 = vector.load %arg5[%c0_13, %c0_14] : memref<2x32xf32, #tpu.memory_space<vmem>>, vector<2x32xf32>
    tpu.vector_store %arg5[%c0_13, %c0_14], %31 {strides = array<i32>} : memref<2x32xf32, #tpu.memory_space<vmem>>, vector<2x32xf32>,
    return
  }
  func.func @transform_0(%arg0: i32) -> (i32, i32, i32) {
    %c0_i32 = arith.constant 0 : i32
    %c0_i32_0 = arith.constant 0 : i32
    %c0_i32_1 = arith.constant 0 : i32
    return %arg0, %c0_i32, %c0_i32_0 : i32, i32, i32
  }
  func.func @transform_1(%arg0: i32) -> (i32, i32) {
    %c0_i32 = arith.constant 0 : i32
    %c0_i32_0 = arith.constant 0 : i32
    %c0_i32_1 = arith.constant 0 : i32
    return %c0_i32, %c0_i32_0 : i32, i32
  }
  func.func @transform_2(%arg0: i32) -> (i32, i32) {
    %c0_i32 = arith.constant 0 : i32
    %c0_i32_0 = arith.constant 0 : i32
    %c0_i32_1 = arith.constant 0 : i32
    return %c0_i32, %c0_i32_0 : i32, i32
  }
  func.func @transform_3(%arg0: i32) -> (i32, i32) {
    %c0_i32 = arith.constant 0 : i32
    %c0_i32_0 = arith.constant 0 : i32
    %c0_i32_1 = arith.constant 0 : i32
    return %c0_i32, %c0_i32_0 : i32, i32
  }
  func.func @transform_4(%arg0: i32) -> (i32, i32) {
    %c0_i32 = arith.constant 0 : i32
    %c0_i32_0 = arith.constant 0 : i32
    return %arg0, %c0_i32 : i32, i32
  }
}

</mosaic_0001>

<llo_original>
// kernel: tpu_custom_call.1
$region0: #{tpu_custom_call.1}
  #allocation0 [shape = 'u32[]', space=smem, size = 0x4, offset = 0x4, fixed_abs, tag = 'smem constant byte address 0x4 - core index']
  #allocation1 [shape = 'u32[144,128]{1,0:T(1,128)}', space=vmem, size = 0x12000, scoped, tag = 'internal scratch']
  %s0 = inlined_call_operand.hbm [shape: f32[2,8,32], index: 0, kind: input, shape index: {}]
  %s1 = inlined_call_operand.hbm [shape: f32[32,32], index: 1, kind: input, shape index: {}]
  %s2 = inlined_call_operand.vmem [shape: f32[1,32], index: 2, kind: input, shape index: {}]
  %s3 = inlined_call_operand.vmem [shape: f32[1,32], index: 3, kind: input, shape index: {}]
  %s4 = inlined_call_operand.hbm [shape: f32[2,32], index: 4, kind: output, shape index: {}]
  %s5 = sld [smem:[#allocation0]]
  $region34: #{tpu_custom_call.1} parent=0
    _
  %s7 = ssub.s32 1, %s5
  %s8 = scalar_select 0, %s7, %s5
  $region1: #{tpu_custom_call.1} parent=0
    #allocation2 [shape = 'u8[8192]{0}', space=vmem, size = 0x2000, scoped, tag = 'input window, operand 0, single buffered']
    #allocation3 [shape = 's32[1]{0}', space=sflag, size = 0x4, scoped, tag = 'scoped memory for tpu_custom_call.1']
    #allocation4 [shape = 's32[1]{0}', space=sflag, size = 0x4, scoped, tag = 'scoped memory for tpu_custom_call.1']
    #allocation5 [shape = 'u8[16384]{0}', space=vmem, size = 0x4000, scoped, tag = 'input window, operand 1, single buffered']
    #allocation6 [shape = 's32[1]{0}', space=sflag, size = 0x4, scoped, tag = 'scoped memory for tpu_custom_call.1']
    #allocation7 [shape = 'u8[1024]{0}', space=vmem, size = 0x400, scoped, tag = 'output window, operand 0, single buffered']
    %9 = vsyncpa [#allocation3], 0
    %10 = vsyncpa [#allocation6], 0
    %11 = vsyncpa [#allocation4], 0
    // Predicated region
    $region2: #{tpu_custom_call.1} parent=1 // pred_check
      _
    $region3: #{tpu_custom_call.1} parent=1 // pred_check_branch
      %13 = sbr.rel (0) target = $region5
    $region4: #{tpu_custom_call.1} parent=1 // pred_region
      %s15 = ssub.s32 256, 256
      %16 = vsyncadd [#allocation3], %s15
      %s17 = sshll.u32 [#allocation2], 4
      %s18 = int_to_ptr.vmem [resolvable:$true] %s17
      %23 = dma.hbm_to_vmem [thread:$0]  %s0, 256, %s18, [#allocation3], 128, 128, 8
    $region5: #{tpu_custom_call.1} parent=1 // pred_fallthru
      _
    // Predicated region
    $region6: #{tpu_custom_call.1} parent=1 // pred_check
      _
    $region7: #{tpu_custom_call.1} parent=1 // pred_check_branch
      %25 = sbr.rel (0) target = $region9
    $region8: #{tpu_custom_call.1} parent=1 // pred_region
      %s27 = ssub.s32 512, 512
      %28 = vsyncadd [#allocation6], %s27
      %s29 = sshll.u32 [#allocation5], 4
      %s30 = int_to_ptr.vmem [resolvable:$true] %s29
      %35 = dma.hbm_to_vmem [thread:$0]  %s1, 512, %s30, [#allocation6], 128, 128, 8
    $region9: #{tpu_custom_call.1} parent=1 // pred_fallthru
      _
    // Predicated region
    $region10: #{tpu_custom_call.1} parent=1 // pred_check
      _
    $region11: #{tpu_custom_call.1} parent=1 // pred_check_branch
      %37 = sbr.rel (0) target = $region13
    $region12: #{tpu_custom_call.1} parent=1 // pred_region
      _
    $region13: #{tpu_custom_call.1} parent=1 // pred_fallthru
      _
    // Predicated region
    $region14: #{tpu_custom_call.1} parent=1 // pred_check
      _
    $region15: #{tpu_custom_call.1} parent=1 // pred_check_branch
      %39 = sbr.rel (0) target = $region17
    $region16: #{tpu_custom_call.1} parent=1 // pred_region
      _
    $region17: #{tpu_custom_call.1} parent=1 // pred_fallthru
      _
    // Predicated region
    $region18: #{tpu_custom_call.1} parent=1 // pred_check
      _
    $region19: #{tpu_custom_call.1} parent=1 // pred_check_branch
      %41 = sbr.rel (0) target = $region21
    $region20: #{tpu_custom_call.1} parent=1 // pred_region
      %42 = dma.done [#allocation3], 256
    $region21: #{tpu_custom_call.1} parent=1 // pred_fallthru
      _
    // Predicated region
    $region22: #{tpu_custom_call.1} parent=1 // pred_check
      _
    $region23: #{tpu_custom_call.1} parent=1 // pred_check_branch
      %44 = sbr.rel (0) target = $region25
    $region24: #{tpu_custom_call.1} parent=1 // pred_region
      %45 = dma.done [#allocation6], 512
    $region25: #{tpu_custom_call.1} parent=1 // pred_fallthru
      _
    %v46 = vld [vmem:[#allocation2] sm:$0xff]
    %v47 = vld [vmem:[#allocation2 + $0x8] sm:$0xff]
    %v48 = vld [vmem:[#allocation5] sm:$0xff]
    %v49 = vld [vmem:[#allocation5 + $0x8] sm:$0xff]
    %v50 = vld [vmem:[#allocation5 + $0x10] sm:$0xff]
    %v51 = vld [vmem:[#allocation5 + $0x18] sm:$0xff]
    %v52 = vld [vmem:[%s2] sm:$0x1]
    %v54 = vlaneseq
    %v55 = vshrl.u32 %v54, 7
    %v56 = vsub.s32 0, %v55
    %v57 = vrot.slane %v52, %v56
    %vm59 = vcmask 261120
    %v61 = vsel %vm59, %v46, 0
    %v64 = vsel %vm59, %v47, 0
    %66 = vmatprep.subr.mxu0 0.0
    %67 = vmatpush1.msra.mxu0 0.0
    %68 = vmatprep.subr.mxu0 0.0
    %69 = vmatpush1.msra.mxu0 0.0
    %70 = vmatprep.subr.mxu0 0.0
    %71 = vmatpush1.msra.mxu0 0.0
    %72 = vmatprep.subr.mxu0 0.0
    %73 = vmatpush1.msra.mxu0 0.0
    %74 = vmatprep.subr.mxu0 0.0
    %75 = vmatpush1.msra.mxu0 0.0
    %76 = vmatprep.subr.mxu0 0.0
    %77 = vmatpush1.msra.mxu0 0.0
    %78 = vmatprep.subr.mxu0 0.0
    %79 = vmatpush1.msra.mxu0 0.0
    %80 = vmatprep.subr.mxu0 0.0
    %81 = vmatpush1.msra.mxu0 0.0
    %82 = vmatprep.subr.mxu0 0.0
    %83 = vmatpush1.msra.mxu0 0.0
    %84 = vmatprep.subr.mxu0 0.0
    %85 = vmatpush1.msra.mxu0 0.0
    %86 = vmatprep.subr.mxu0 0.0
    %87 = vmatpush1.msra.mxu0 0.0
    %88 = vmatprep.subr.mxu0 0.0
    %89 = vmatpush1.msra.mxu0 0.0
    %90 = vmatprep.subr.mxu0 0.0
    %91 = vmatpush1.msra.mxu0 %v51
    %92 = vmatprep.subr.mxu0 0.0
    %93 = vmatpush1.msra.mxu0 %v50
    %94 = vmatprep.subr.mxu0 0.0
    %95 = vmatpush1.msra.mxu0 %v49
    %96 = vmatprep.subr.mxu0 0.0
    %97 = vmatpush1.msra.mxu0 %v48
    %98 = vmatprep.subr.mxu0 0.0
    %99 = vmatpush2.msra.mxu0 0.0
    %100 = vmatprep.subr.mxu0 0.0
    %101 = vmatpush2.msra.mxu0 0.0
    %102 = vmatprep.subr.mxu0 0.0
    %103 = vmatpush2.msra.mxu0 0.0
    %104 = vmatprep.subr.mxu0 0.0
    %105 = vmatpush2.msra.mxu0 0.0
    %106 = vmatprep.subr.mxu0 0.0
    %107 = vmatpush2.msra.mxu0 0.0
    %108 = vmatprep.subr.mxu0 0.0
    %109 = vmatpush2.msra.mxu0 0.0
    %110 = vmatprep.subr.mxu0 0.0
    %111 = vmatpush2.msra.mxu0 0.0
    %112 = vmatprep.subr.mxu0 0.0
    %113 = vmatpush2.msra.mxu0 0.0
    %114 = vmatprep.subr.mxu0 0.0
    %115 = vmatpush2.msra.mxu0 0.0
    %116 = vmatprep.subr.mxu0 0.0
    %117 = vmatpush2.msra.mxu0 0.0
    %118 = vmatprep.subr.mxu0 0.0
    %119 = vmatpush2.msra.mxu0 0.0
    %120 = vmatprep.subr.mxu0 0.0
    %121 = vmatpush2.msra.mxu0 0.0
    %122 = vmatprep.subr.mxu0 0.0
    %123 = vmatpush2.msra.mxu0 0.0
    %124 = vmatprep.subr.mxu0 0.0
    %125 = vmatpush2.msra.mxu0 0.0
    %126 = vmatprep.subr.mxu0 0.0
    %127 = vmatpush2.msra.mxu0 0.0
    %128 = vmatprep.subr.mxu0 0.0
    %129 = vmatpush2.msra.mxu0 0.0
    %130 = vmatprep.mubr.f32.mxu0 0.0
    %131 = vmatmul.mubr.f32.gmra.mxu0 %v61
    %v132 = vpop.f32.mrf.mxu0
    %v133 = vadd.f32 %v57, %v132
    %v134 = vpop.f32.mrf.mxu0
    %135 = vmatprep.mubr.f32.mxu0 0.0
    %136 = vmatmul.mubr.f32.gmra.mxu0 %v64
    %v137 = vpop.f32.mrf.mxu0
    %v138 = vadd.f32 %v57, %v137
    %v139 = vpop.f32.mrf.mxu0
    %140 = vdwg.mxu0
    %v141 = vtanh.pop %v133
    %v142 = vtanh.pop %v138
    %v143 = vld [vmem:[%s3] sm:$0x1]
    %v145 = vlaneseq
    %v146 = vshrl.u32 %v145, 7
    %v147 = vsub.s32 0, %v146
    %v148 = vrot.slane %v143, %v147
    %v150 = vmul.f32 %v141, %v148
    %v151 = vmul.f32 %v142, %v148
    %v152 = vsel %vm59, %v150, 0.0
    %153 = vadd.xlane.f32.xlu0 %v152
    %v154 = vpop.xlane.xlu0 %153
    %v155 = vsel %vm59, %v151, 0.0
    %156 = vadd.xlane.f32.xlu0 %v155
    %v157 = vpop.xlane.xlu0 %156
    %v160 = vlaneseq
    %v161 = vand.u32 %v160, 127
    %v162 = vlaneseq
    %v163 = vshrl.u32 %v162, 7
    %v164 = vsub.s32 %v161, %v163
    %v165 = vrot.slane %v154, %v164
    %v166 = vlaneseq
    %v167 = vshrl.u32 %v166, 7
    %v168 = vsub.s32 %v161, %v167
    %v169 = vrot.slane %v157, %v168
    %vm170 = vcmask 1041409
    %v171 = vsel %vm170, %v169, %v165
    %vm173 = vcmask 58368
    %v174 = vsel %vm173, %v171, -inf
    %175 = vmax.xlane.f32.xlu0 %v174
    %v176 = vpop.xlane.xlu0 %175
    %v178 = vlaneseq
    %v179 = vshrl.u32 %v178, 7
    %v180 = vsub.s32 0, %v179
    %v181 = vrot.slane %v176, %v180
    %v182 = vlaneseq
    %v183 = vshrl.u32 %v182, 7
    %v184 = vsub.s32 1, %v183
    %v185 = vrot.slane %v176, %v184
    %v188 = vsub.f32 %v154, %v181
    %v189 = vsub.f32 %v157, %v185
    %v190 = vmul.f32 %v188, 1.442695
    %v191 = vpow.pop %v190
    %v192 = vmul.f32 %v189, 1.442695
    %v193 = vpow.pop %v192
    %196 = vset.pattern.permute.xlu0 0
    %197 = vperm.xlu0 %196, %v191
    %v198 = vpop.permute.xlu0 %197
    %199 = vset.pattern.permute.xlu0 0
    %200 = vperm.xlu0 %199, %v193
    %v201 = vpop.permute.xlu0 %200
    %v202 = vlaneseq
    %v203 = vshrl.u32 %v202, 7
    %v204 = vsub.s32 %v161, %v203
    %v205 = vrot.slane %v198, %v204
    %v206 = vlaneseq
    %v207 = vshrl.u32 %v206, 7
    %v208 = vsub.s32 %v161, %v207
    %v209 = vrot.slane %v201, %v208
    %v210 = vsel %vm170, %v209, %v205
    %v212 = vsel %vm173, %v210, 0.0
    %213 = vadd.xlane.f32.xlu0 %v212
    %v214 = vpop.xlane.xlu0 %213
    %v215 = vrcp.pop %v214
    %v216 = vmul.f32 %v214, %v215
    %v217 = vsub.f32 2.0, %v216
    %v218 = vmul.f32 %v215, %v217
    %v220 = vlaneseq
    %v221 = vshrl.u32 %v220, 7
    %v222 = vsub.s32 0, %v221
    %v223 = vrot.slane %v218, %v222
    %v224 = vlaneseq
    %v225 = vshrl.u32 %v224, 7
    %v226 = vsub.s32 1, %v225
    %v227 = vrot.slane %v218, %v226
    %v230 = vmul.f32 %v191, %v223
    %v231 = vmul.f32 %v193, %v227
    %233 = vset.pattern.permute.xlu0 0
    %234 = vperm.xlu0 %233, %v230
    %v235 = vpop.permute.xlu0 %234
    %238 = vset.pattern.permute.xlu0 0
    %239 = vperm.xlu0 %238, %v231
    %v240 = vpop.permute.xlu0 %239
    %v242 = vmul.f32 %v46, %v235
    %v243 = vmul.f32 %v47, %v240
    %v244 = vsel %vm59, %v242, 0.0
    %v245 = vrot.slane %v244, 4
    %v246 = vadd.f32 %v244, %v245
    %v247 = vrot.slane %v246, 2
    %v248 = vadd.f32 %v246, %v247
    %v249 = vrot.slane %v248, 1
    %v250 = vadd.f32 %v248, %v249
    %v251 = vsel %vm59, %v243, 0.0
    %v252 = vrot.slane %v251, 4
    %v253 = vadd.f32 %v251, %v252
    %v254 = vrot.slane %v253, 2
    %v255 = vadd.f32 %v253, %v254
    %v256 = vrot.slane %v255, 1
    %v257 = vadd.f32 %v255, %v256
    %v260 = vsel %vm170, %v257, %v250
    %vm262 = vcmask 254976
    %263 = vst.msk [vmem:[#allocation7] sm:$0x3] %vm262, %v260
    // Predicated region
    $region26: #{tpu_custom_call.1} parent=1 // pred_check
      _
    $region27: #{tpu_custom_call.1} parent=1 // pred_check_branch
      %265 = sbr.rel (0) target = $region29
    $region28: #{tpu_custom_call.1} parent=1 // pred_region
      %s267 = ssub.s32 32, 32
      %268 = vsyncadd [#allocation4], %s267
      %s270 = sshll.u32 [#allocation7], 4
      %s271 = int_to_ptr.vmem [resolvable:$true] %s270
      %273 = dma.vmem_to_hbm [thread:$0]  %s271, 32, %s4, [#allocation4]
    $region29: #{tpu_custom_call.1} parent=1 // pred_fallthru
      _
    // Predicated region
    $region30: #{tpu_custom_call.1} parent=1 // pred_check
      _
    $region31: #{tpu_custom_call.1} parent=1 // pred_check_branch
      %275 = sbr.rel (0) target = $region33
    $region32: #{tpu_custom_call.1} parent=1 // pred_region
      %276 = dma.done [#allocation4], 32
    $region33: #{tpu_custom_call.1} parent=1 // pred_fallthru
      _
    %277 = vsyncpa [#allocation3], 1
    %278 = vsyncpa [#allocation6], 1
    %279 = vsyncpa [#allocation4], 1

</llo_original>
